<compile_context>
chip_gen: v7x
topology: tpu7x:2x2x1
jax: 0.10.0
libtpu: 0.0.40
codegen_flags: <defaults>
</compile_context>

<pallas_src>
import functools

import jax
import jax.numpy as jnp
from jax.experimental import pallas as pl
from jax.experimental.pallas import tpu as pltpu


def _round_up(a, b):
    return (a + b - 1) // b * b


def corr2d_bias_kernel(w_ref, b_ref, x_ref, y_ref, *, kh, kw):
    """w_ref: (kh*kw,) f32 SMEM, b_ref: (1,) f32 SMEM,
    x_ref: (Hp, Wp) f32 VMEM, y_ref: (out_h_pad, Wp) f32 VMEM."""
    out_h_pad, wp = y_ref.shape

    x = x_ref[...]  # single full-width VMEM load

    # Hoist all scalar weight reads (and hence their vreg broadcasts) out of
    # the unrolled FMA chain.
    w = [w_ref[i] for i in range(kh * kw)]

    acc = jnp.zeros((out_h_pad, wp), jnp.float32)
    # kh/kw are static -> fully unrolled at trace time.
    for dj in range(kw):
        # One XLU lane-rotation per column offset, shared by all kh row offsets.
        # Wrapped-around columns only land in the padded region (>= out_w),
        # which the wrapper slices away.
        xs = x if dj == 0 else pltpu.roll(x, shift=(wp - dj) % wp, axis=1)
        for di in range(kh):
            acc = acc + w[di * kw + dj] * xs[di:di + out_h_pad, :]

    # (8,128)-aligned, lane-dense store -> unmasked vst.
    y_ref[...] = acc + b_ref[0]


def conv2d_forward(x, weight, bias):
    """Pallas equivalent of Conv2D.forward: corr2d(x, weight) + bias."""
    H, W = x.shape
    kh, kw = weight.shape
    out_h, out_w = H - kh + 1, W - kw + 1

    # Lane/sublane-dense padded geometry.
    out_h_pad = _round_up(out_h, 8)            # sublane-aligned output rows
    wp = _round_up(W, 128)                     # lane-dense width (>= out_w + kw - 1)
    hp = _round_up(out_h_pad + kh - 1, 8)      # input rows needed by the row shifts

    x_pad = jnp.zeros((hp, wp), jnp.float32).at[:H, :W].set(x.astype(jnp.float32))
    w_flat = weight.reshape(-1).astype(jnp.float32)   # 1-D SMEM
    b = bias.reshape(-1).astype(jnp.float32)

    kernel = functools.partial(corr2d_bias_kernel, kh=kh, kw=kw)

    cost = pl.CostEstimate(
        flops=2 * kh * kw * out_h_pad * wp,
        transcendentals=0,
        bytes_accessed=4 * (hp * wp + out_h_pad * wp + kh * kw + 1),
    )

    y_pad = pl.pallas_call(
        kernel,
        out_shape=jax.ShapeDtypeStruct((out_h_pad, wp), jnp.float32),
        in_specs=[
            pl.BlockSpec(memory_space=pltpu.MemorySpace.SMEM),   # weight (scalars)
            pl.BlockSpec(memory_space=pltpu.MemorySpace.SMEM),   # bias (scalar)
            pl.BlockSpec(memory_space=pltpu.MemorySpace.VMEM),   # padded x, full block
        ],
        out_specs=pl.BlockSpec(memory_space=pltpu.MemorySpace.VMEM),
        compiler_params=pltpu.CompilerParams(vmem_limit_bytes=32 * 1024 * 1024),
        cost_estimate=cost,
    )(w_flat, b, x_pad)

    # Slice the valid (unpadded) output region outside the kernel.
    return y_pad[:out_h, :out_w]


def _reference(x, weight, bias):
    """Pure-JAX reference of corr2d + bias (shifted-window formulation)."""
    H, W = x.shape
    kh, kw = weight.shape
    out_h, out_w = H - kh + 1, W - kw + 1
    acc = jnp.zeros((out_h, out_w), jnp.float32)
    for di in range(kh):
        for dj in range(kw):
            acc = acc + weight[di, dj] * x[di:di + out_h, dj:dj + out_w]
    return acc + bias[0]


if __name__ == "__main__":
    key = jax.random.PRNGKey(0)
    kx, kw_, kb = jax.random.split(key, 3)

    # Shapes consistent with the module: a single 2D image, 3x3 kernel.
    H, W = 16, 16
    kernel_size = (3, 3)

    x = jax.random.uniform(kx, (H, W), dtype=jnp.float32)
    # Conv2D.__init__: weight = torch.rand(kernel_size), bias = torch.zeros(1)
    weight = jax.random.uniform(kw_, kernel_size, dtype=jnp.float32)
    bias = jnp.zeros((1,), dtype=jnp.float32)

    y = jax.block_until_ready(conv2d_forward(x, weight, bias))
    y_ref = _reference(x, weight, bias)
    assert y.shape == (H - kernel_size[0] + 1, W - kernel_size[1] + 1)
    assert jnp.allclose(y, y_ref, atol=1e-5, rtol=1e-5)

    # Second check: non-128-aligned width, different kernel size, nonzero bias.
    H2, W2, ks2 = 24, 200, (5, 3)
    x2 = jax.random.uniform(kx, (H2, W2), dtype=jnp.float32)
    w2 = jax.random.uniform(kw_, ks2, dtype=jnp.float32)
    b2 = jax.random.uniform(kb, (1,), dtype=jnp.float32)
    y2 = jax.block_until_ready(conv2d_forward(x2, w2, b2))
    assert y2.shape == (H2 - ks2[0] + 1, W2 - ks2[1] + 1)
    assert jnp.allclose(y2, _reference(x2, w2, b2), atol=1e-4, rtol=1e-4)

    print("KERNEL_OK")
</pallas_src>

<mosaic_0001>
module attributes {stable_mosaic.version = 11 : i64} {
  func.func @corr2d_bias_kernel(%arg0: memref<9xf32, #tpu.memory_space<smem>>, %arg1: memref<1xf32, #tpu.memory_space<smem>>, %arg2: memref<24x128xf32, #tpu.memory_space<vmem>>, %arg3: memref<16x128xf32, #tpu.memory_space<vmem>>) attributes {dimension_semantics = [], scalar_prefetch = 0 : i64, scratch_operands = 0 : i64, tpu.core_type = #tpu.core_type<tc>} {
    %c0 = arith.constant 0 : index
    %c0_0 = arith.constant 0 : index
    %0 = vector.load %arg2[%c0, %c0_0] : memref<24x128xf32, #tpu.memory_space<vmem>>, vector<24x128xf32>
    %c0_1 = arith.constant 0 : index
    %1 = memref.load %arg0[%c0_1] : memref<9xf32, #tpu.memory_space<smem>>
    %c1 = arith.constant 1 : index
    %2 = memref.load %arg0[%c1] : memref<9xf32, #tpu.memory_space<smem>>
    %c2 = arith.constant 2 : index
    %3 = memref.load %arg0[%c2] : memref<9xf32, #tpu.memory_space<smem>>
    %c3 = arith.constant 3 : index
    %4 = memref.load %arg0[%c3] : memref<9xf32, #tpu.memory_space<smem>>
    %c4 = arith.constant 4 : index
    %5 = memref.load %arg0[%c4] : memref<9xf32, #tpu.memory_space<smem>>
    %c5 = arith.constant 5 : index
    %6 = memref.load %arg0[%c5] : memref<9xf32, #tpu.memory_space<smem>>
    %c6 = arith.constant 6 : index
    %7 = memref.load %arg0[%c6] : memref<9xf32, #tpu.memory_space<smem>>
    %c7 = arith.constant 7 : index
    %8 = memref.load %arg0[%c7] : memref<9xf32, #tpu.memory_space<smem>>
    %c8 = arith.constant 8 : index
    %9 = memref.load %arg0[%c8] : memref<9xf32, #tpu.memory_space<smem>>
    %cst = arith.constant 0.000000e+00 : f32
    %10 = vector.broadcast %cst : f32 to vector<16x128xf32>
    %11 = vector.extract_strided_slice %0 {offsets = [0, 0], sizes = [16, 128], strides = [1, 1]} : vector<24x128xf32> to vector<16x128xf32>
    %12 = vector.broadcast %1 : f32 to vector<16x128xf32>
    %13 = arith.mulf %12, %11 : vector<16x128xf32>
    %14 = arith.addf %10, %13 : vector<16x128xf32>
    %15 = vector.extract_strided_slice %0 {offsets = [1, 0], sizes = [16, 128], strides = [1, 1]} : vector<24x128xf32> to vector<16x128xf32>
    %16 = vector.broadcast %4 : f32 to vector<16x128xf32>
    %17 = arith.mulf %16, %15 : vector<16x128xf32>
    %18 = arith.addf %14, %17 : vector<16x128xf32>
    %19 = vector.extract_strided_slice %0 {offsets = [2, 0], sizes = [16, 128], strides = [1, 1]} : vector<24x128xf32> to vector<16x128xf32>
    %20 = vector.broadcast %7 : f32 to vector<16x128xf32>
    %21 = arith.mulf %20, %19 : vector<16x128xf32>
    %22 = arith.addf %18, %21 : vector<16x128xf32>
    %c127_i32 = arith.constant 127 : i32
    %23 = tpu.dynamic_rotate %0 by %c127_i32 dim 1 : vector<24x128xf32>, i32 -> vector<24x128xf32>
    %24 = vector.extract_strided_slice %23 {offsets = [0, 0], sizes = [16, 128], strides = [1, 1]} : vector<24x128xf32> to vector<16x128xf32>
    %25 = vector.broadcast %2 : f32 to vector<16x128xf32>
    %26 = arith.mulf %25, %24 : vector<16x128xf32>
    %27 = arith.addf %22, %26 : vector<16x128xf32>
    %28 = vector.extract_strided_slice %23 {offsets = [1, 0], sizes = [16, 128], strides = [1, 1]} : vector<24x128xf32> to vector<16x128xf32>
    %29 = vector.broadcast %5 : f32 to vector<16x128xf32>
    %30 = arith.mulf %29, %28 : vector<16x128xf32>
    %31 = arith.addf %27, %30 : vector<16x128xf32>
    %32 = vector.extract_strided_slice %23 {offsets = [2, 0], sizes = [16, 128], strides = [1, 1]} : vector<24x128xf32> to vector<16x128xf32>
    %33 = vector.broadcast %8 : f32 to vector<16x128xf32>
    %34 = arith.mulf %33, %32 : vector<16x128xf32>
    %35 = arith.addf %31, %34 : vector<16x128xf32>
    %c126_i32 = arith.constant 126 : i32
    %36 = tpu.dynamic_rotate %0 by %c126_i32 dim 1 : vector<24x128xf32>, i32 -> vector<24x128xf32>
    %37 = vector.extract_strided_slice %36 {offsets = [0, 0], sizes = [16, 128], strides = [1, 1]} : vector<24x128xf32> to vector<16x128xf32>
    %38 = vector.broadcast %3 : f32 to vector<16x128xf32>
    %39 = arith.mulf %38, %37 : vector<16x128xf32>
    %40 = arith.addf %35, %39 : vector<16x128xf32>
    %41 = vector.extract_strided_slice %36 {offsets = [1, 0], sizes = [16, 128], strides = [1, 1]} : vector<24x128xf32> to vector<16x128xf32>
    %42 = vector.broadcast %6 : f32 to vector<16x128xf32>
    %43 = arith.mulf %42, %41 : vector<16x128xf32>
    %44 = arith.addf %40, %43 : vector<16x128xf32>
    %45 = vector.extract_strided_slice %36 {offsets = [2, 0], sizes = [16, 128], strides = [1, 1]} : vector<24x128xf32> to vector<16x128xf32>
    %46 = vector.broadcast %9 : f32 to vector<16x128xf32>
    %47 = arith.mulf %46, %45 : vector<16x128xf32>
    %48 = arith.addf %44, %47 : vector<16x128xf32>
    %c0_2 = arith.constant 0 : index
    %49 = memref.load %arg1[%c0_2] : memref<1xf32, #tpu.memory_space<smem>>
    %50 = vector.broadcast %49 : f32 to vector<16x128xf32>
    %51 = arith.addf %48, %50 : vector<16x128xf32>
    %c0_3 = arith.constant 0 : index
    %c0_4 = arith.constant 0 : index
    %52 = vector.load %arg3[%c0_3, %c0_4] : memref<16x128xf32, #tpu.memory_space<vmem>>, vector<16x128xf32>
    tpu.vector_store %arg3[%c0_3, %c0_4], %51 {strides = array<i32>} : memref<16x128xf32, #tpu.memory_space<vmem>>, vector<16x128xf32>,
    return
  }
}

</mosaic_0001>

<llo_original>
// kernel: tpu_custom_call.1
$region0: #{tpu_custom_call.1}
  #allocation0 [shape = 'u32[]', space=smem, size = 0x4, offset = 0x4, fixed_abs, tag = 'smem constant byte address 0x4 - core index']
  #allocation1 [shape = 'u32[144,128]{1,0:T(1,128)}', space=vmem, size = 0x12000, scoped, tag = 'internal scratch']
  #allocation2 [shape = 'f32[1]{0:T(128)S(6)}', space=smem, size = 0x200, scoped, tag = 'scoped memory for tpu_custom_call.1']
  %s0 = inlined_call_operand.vmem [shape: f32[9], index: 0, kind: input, shape index: {}]
  %s1 = inlined_call_operand.<no memory space> [shape: f32[1], index: 1, kind: input, shape index: {}]
  %s2 = inlined_call_operand.hbm [shape: f32[24,128], index: 2, kind: input, shape index: {}]
  %s3 = inlined_call_operand.hbm [shape: f32[16,128], index: 3, kind: output, shape index: {}]
  %s4 = sld [smem:[#allocation0]]
  $region30: #{tpu_custom_call.1} parent=0
    _
  %s6 = ssub.s32 1, %s4
  %s7 = scalar_select 0, %s6, %s4
  %8 = sst [smem:[#allocation2]] %s1
  $region1: #{tpu_custom_call.1} parent=0
    #allocation3 [shape = 'u8[512]{0}', space=smem, size = 0x200, scoped, tag = 'input window, operand 0, single buffered']
    #allocation4 [shape = 's32[1]{0}', space=sflag, size = 0x4, scoped, tag = 'scoped memory for tpu_custom_call.1']
    #allocation5 [shape = 's32[1]{0}', space=sflag, size = 0x4, scoped, tag = 'scoped memory for tpu_custom_call.1']
    #allocation6 [shape = 's32[1]{0}', space=sflag, size = 0x4, scoped, tag = 'scoped memory for tpu_custom_call.1']
    #allocation7 [shape = 'u8[12288]{0}', space=vmem, size = 0x3000, scoped, tag = 'input window, operand 2, single buffered']
    #allocation8 [shape = 'u8[8192]{0}', space=vmem, size = 0x2000, scoped, tag = 'output window, operand 0, single buffered']
    %9 = vsyncpa [#allocation6], 0
    %10 = vsyncpa [#allocation4], 0
    %11 = vsyncpa [#allocation5], 0
    // Predicated region
    $region2: #{tpu_custom_call.1} parent=1 // pred_check
      _
    $region3: #{tpu_custom_call.1} parent=1 // pred_check_branch
      %13 = sbr.rel (0) target = $region5
    $region4: #{tpu_custom_call.1} parent=1 // pred_region
      %s15 = ssub.s32 16, 16
      %16 = vsyncadd [#allocation6], %s15
      %s18 = sshll.u32 %s0, 4
      %s19 = int_to_ptr.vmem [resolvable:$true] %s18
      %21 = dma.vmem_to_smem %s19, 16, [#allocation3], [#allocation6]
    $region5: #{tpu_custom_call.1} parent=1 // pred_fallthru
      _
    // Predicated region
    $region6: #{tpu_custom_call.1} parent=1 // pred_check
      _
    $region7: #{tpu_custom_call.1} parent=1 // pred_check_branch
      %23 = sbr.rel (0) target = $region9
    $region8: #{tpu_custom_call.1} parent=1 // pred_region
      _
    $region9: #{tpu_custom_call.1} parent=1 // pred_fallthru
      _
    // Predicated region
    $region10: #{tpu_custom_call.1} parent=1 // pred_check
      _
    $region11: #{tpu_custom_call.1} parent=1 // pred_check_branch
      %25 = sbr.rel (0) target = $region13
    $region12: #{tpu_custom_call.1} parent=1 // pred_region
      %s27 = ssub.s32 384, 384
      %28 = vsyncadd [#allocation4], %s27
      %s29 = sshll.u32 [#allocation7], 4
      %s30 = int_to_ptr.vmem [resolvable:$true] %s29
      %35 = dma.hbm_to_vmem [thread:$0]  %s2, 384, %s30, [#allocation4], 128, 128, 8
    $region13: #{tpu_custom_call.1} parent=1 // pred_fallthru
      _
    // Predicated region
    $region14: #{tpu_custom_call.1} parent=1 // pred_check
      _
    $region15: #{tpu_custom_call.1} parent=1 // pred_check_branch
      %37 = sbr.rel (0) target = $region17
    $region16: #{tpu_custom_call.1} parent=1 // pred_region
      %38 = dma.done [#allocation6], 16
    $region17: #{tpu_custom_call.1} parent=1 // pred_fallthru
      _
    // Predicated region
    $region18: #{tpu_custom_call.1} parent=1 // pred_check
      _
    $region19: #{tpu_custom_call.1} parent=1 // pred_check_branch
      %40 = sbr.rel (0) target = $region21
    $region20: #{tpu_custom_call.1} parent=1 // pred_region
      %41 = dma.done [#allocation4], 384
    $region21: #{tpu_custom_call.1} parent=1 // pred_fallthru
      _
    %42 = sfence
    %v43 = vld [vmem:[#allocation7] sm:$0xff]
    %v44 = vld [vmem:[#allocation7 + $0x8] sm:$0xff]
    %v45 = vld [vmem:[#allocation7 + $0x10] sm:$0xff]
    %s46 = sld [smem:[#allocation3]]
    %s47 = sld [smem:[#allocation3 + $0x1]]
    %s48 = sld [smem:[#allocation3 + $0x2]]
    %s49 = sld [smem:[#allocation3 + $0x3]]
    %s50 = sld [smem:[#allocation3 + $0x4]]
    %s51 = sld [smem:[#allocation3 + $0x5]]
    %s52 = sld [smem:[#allocation3 + $0x6]]
    %s53 = sld [smem:[#allocation3 + $0x7]]
    %s54 = sld [smem:[#allocation3 + $0x8]]
    %v55 = vstv %s46
    %v56 = vmul.f32 %v55, %v43
    %v57 = vmul.f32 %v55, %v44
    %v58 = vadd.f32 %v56, 0.0
    %v59 = vadd.f32 %v57, 0.0
    %v60 = vstv %s49
    %v61 = vmul.f32 %v60, %v43
    %v62 = vmul.f32 %v60, %v44
    %v63 = vmul.f32 %v60, %v45
    %vm67 = vcmask 1046528
    %v68 = vrot.slane %v61, 1
    %v69 = vrot.slane %v62, 1
    %v70 = vsel %vm67, %v68, %v69
    %v71 = vrot.slane %v63, 1
    %v72 = vsel %vm67, %v69, %v71
    %v75 = vadd.f32 %v58, %v70
    %v76 = vadd.f32 %v59, %v72
    %v77 = vstv %s52
    %v78 = vmul.f32 %v77, %v43
    %v79 = vmul.f32 %v77, %v44
    %v80 = vmul.f32 %v77, %v45
    %vm84 = vcmask 1045504
    %v85 = vrot.slane %v78, 2
    %v86 = vrot.slane %v79, 2
    %v87 = vsel %vm84, %v85, %v86
    %v88 = vrot.slane %v80, 2
    %v89 = vsel %vm84, %v86, %v88
    %v92 = vadd.f32 %v75, %v87
    %v93 = vadd.f32 %v76, %v89
    %94 = vrot.lane.b32.xlu0 %v43, 127
    %v95 = vpop.permute.xlu0 %94
    %96 = vrot.lane.b32.xlu0 %v44, 127
    %v97 = vpop.permute.xlu0 %96
    %98 = vrot.lane.b32.xlu0 %v45, 127
    %v99 = vpop.permute.xlu0 %98
    %v100 = vstv %s47
    %v101 = vmul.f32 %v100, %v95
    %v102 = vmul.f32 %v100, %v97
    %v103 = vadd.f32 %v92, %v101
    %v104 = vadd.f32 %v93, %v102
    %v105 = vstv %s50
    %v106 = vmul.f32 %v105, %v95
    %v107 = vmul.f32 %v105, %v97
    %v108 = vmul.f32 %v105, %v99
    %v112 = vrot.slane %v106, 1
    %v113 = vrot.slane %v107, 1
    %v114 = vsel %vm67, %v112, %v113
    %v115 = vrot.slane %v108, 1
    %v116 = vsel %vm67, %v113, %v115
    %v119 = vadd.f32 %v103, %v114
    %v120 = vadd.f32 %v104, %v116
    %v121 = vstv %s53
    %v122 = vmul.f32 %v121, %v95
    %v123 = vmul.f32 %v121, %v97
    %v124 = vmul.f32 %v121, %v99
    %v128 = vrot.slane %v122, 2
    %v129 = vrot.slane %v123, 2
    %v130 = vsel %vm84, %v128, %v129
    %v131 = vrot.slane %v124, 2
    %v132 = vsel %vm84, %v129, %v131
    %v135 = vadd.f32 %v119, %v130
    %v136 = vadd.f32 %v120, %v132
    %137 = vrot.lane.b32.xlu0 %v43, 126
    %v138 = vpop.permute.xlu0 %137
    %139 = vrot.lane.b32.xlu0 %v44, 126
    %v140 = vpop.permute.xlu0 %139
    %141 = vrot.lane.b32.xlu0 %v45, 126
    %v142 = vpop.permute.xlu0 %141
    %v143 = vstv %s48
    %v144 = vmul.f32 %v143, %v138
    %v145 = vmul.f32 %v143, %v140
    %v146 = vadd.f32 %v135, %v144
    %v147 = vadd.f32 %v136, %v145
    %v148 = vstv %s51
    %v149 = vmul.f32 %v148, %v138
    %v150 = vmul.f32 %v148, %v140
    %v151 = vmul.f32 %v148, %v142
    %v155 = vrot.slane %v149, 1
    %v156 = vrot.slane %v150, 1
    %v157 = vsel %vm67, %v155, %v156
    %v158 = vrot.slane %v151, 1
    %v159 = vsel %vm67, %v156, %v158
    %v162 = vadd.f32 %v146, %v157
    %v163 = vadd.f32 %v147, %v159
    %v164 = vstv %s54
    %v165 = vmul.f32 %v164, %v138
    %v166 = vmul.f32 %v164, %v140
    %v167 = vmul.f32 %v164, %v142
    %v171 = vrot.slane %v165, 2
    %v172 = vrot.slane %v166, 2
    %v173 = vsel %vm84, %v171, %v172
    %v174 = vrot.slane %v167, 2
    %v175 = vsel %vm84, %v172, %v174
    %v178 = vadd.f32 %v162, %v173
    %v179 = vadd.f32 %v163, %v175
    %s180 = sld [smem:[#allocation2]]
    %v181 = vstv %s180
    %v182 = vadd.f32 %v178, %v181
    %v183 = vadd.f32 %v179, %v181
    %184 = vst [vmem:[#allocation8] sm:$0xff] %v182
    %185 = vst [vmem:[#allocation8 + $0x8] sm:$0xff] %v183
    // Predicated region
    $region22: #{tpu_custom_call.1} parent=1 // pred_check
      _
    $region23: #{tpu_custom_call.1} parent=1 // pred_check_branch
      %187 = sbr.rel (0) target = $region25
    $region24: #{tpu_custom_call.1} parent=1 // pred_region
      %s189 = ssub.s32 256, 256
      %190 = vsyncadd [#allocation5], %s189
      %s191 = sshll.u32 [#allocation8], 4
      %s192 = int_to_ptr.vmem [resolvable:$true] %s191
      %197 = dma.vmem_to_hbm [thread:$0]  %s192, 256, %s3, [#allocation5], 128, 128, 8
    $region25: #{tpu_custom_call.1} parent=1 // pred_fallthru
      _
    // Predicated region
    $region26: #{tpu_custom_call.1} parent=1 // pred_check
      _
    $region27: #{tpu_custom_call.1} parent=1 // pred_check_branch
      %199 = sbr.rel (0) target = $region29
    $region28: #{tpu_custom_call.1} parent=1 // pred_region
      %200 = dma.done [#allocation5], 256
    $region29: #{tpu_custom_call.1} parent=1 // pred_fallthru
      _
    %201 = vsyncpa [#allocation4], 1
    %202 = vsyncpa [#allocation5], 1
    %203 = vsyncpa [#allocation6], 1

</llo_original>
